<compile_context>
chip_gen: v7x
topology: tpu7x:2x2x1
jax: 0.10.0
libtpu: 0.0.40
codegen_flags: <defaults>
</compile_context>

<pallas_src>
import functools

import jax
import jax.numpy as jnp
from jax import lax
from jax.experimental import pallas as pl
from jax.experimental.pallas import tpu as pltpu


def _sigloss_kernel(out_ref, label_ref, loss_ref, *, total_rows):
    i = pl.program_id(0)

    @pl.when(i == 0)
    def _init():
        loss_ref[...] = jnp.zeros_like(loss_ref)

    # Cast to f32 *inside* the kernel; inputs stay in native dtype on the wire.
    o_tile = out_ref[...].astype(jnp.float32)      # (TB, C)
    l_tile = label_ref[...].astype(jnp.float32)    # (TB, C)

    # Heavy reduction over C is lane-dense (C maps to the 128-lane axis).
    o = jnp.sum(o_tile, axis=1, keepdims=True)     # (TB, 1) == torch.sum(out, 1)
    p = jnp.sum(l_tile, axis=1, keepdims=True)     # (TB, 1) == torch.sum(label, 1)

    eps = jnp.float32(1e-08)
    per_row = p * -jnp.log(o + eps) + (1.0 - p) * -jnp.log(1.0 - o + eps)  # (TB, 1)

    # Mask rows past the true batch size (handles the ragged edge tile).
    tb = out_ref.shape[0]
    row_ids = lax.broadcasted_iota(jnp.int32, (tb, 1), 0) + i * tb
    per_row = jnp.where(row_ids < total_rows, per_row, 0.0)

    # Accumulate partial sum into the resident (1,1) output block.
    loss_ref[...] = loss_ref[...] + jnp.sum(per_row, keepdims=True)

    @pl.when(i == pl.num_programs(0) - 1)
    def _finalize():
        loss_ref[...] = loss_ref[...] * jnp.float32(1.0 / total_rows)


def _choose_block_rows(B, C, itemsize, max_block_bytes=4 << 20):
    # Largest row-tile with per-input block <= ~4 MiB, capped at 1024 rows,
    # rounded down to a multiple of 8 sublanes (min 8).
    rows = max_block_bytes // max(1, C * itemsize)
    rows = min(rows, B, 1024)
    rows = max(8, (rows // 8) * 8)
    return int(rows)


def sig_loss(out, label, *, block_rows=None):
    """Pallas TPU implementation of SigLoss.forward. Returns a scalar float32."""
    assert out.shape == label.shape and out.ndim == 2
    B, C = out.shape

    max_itemsize = max(out.dtype.itemsize, label.dtype.itemsize)
    if block_rows is None:
        block_rows = _choose_block_rows(B, C, max_itemsize)
    tb = int(block_rows)
    grid = (pl.cdiv(B, tb),)

    # 2 inputs x 2 pipeline buffers x block bytes, plus slack; clamp to sane range.
    block_bytes = tb * C * (out.dtype.itemsize + label.dtype.itemsize)
    vmem_limit = int(min(max(2 * block_bytes + (2 << 20), 16 << 20), 96 << 20))

    kernel = functools.partial(_sigloss_kernel, total_rows=B)

    loss = pl.pallas_call(
        kernel,
        out_shape=jax.ShapeDtypeStruct((1, 1), jnp.float32),
        grid=grid,
        in_specs=[
            pl.BlockSpec((tb, C), lambda i: (i, 0)),
            pl.BlockSpec((tb, C), lambda i: (i, 0)),
        ],
        out_specs=pl.BlockSpec((1, 1), lambda i: (0, 0)),
        compiler_params=pltpu.CompilerParams(
            dimension_semantics=("arbitrary",),   # single shared accumulator
            vmem_limit_bytes=vmem_limit,
        ),
        cost_estimate=pl.CostEstimate(
            flops=2 * B * C + 8 * B,
            transcendentals=2 * B,
            bytes_accessed=B * C * (out.dtype.itemsize + label.dtype.itemsize) + 4,
        ),
    )(out, label)
    return loss[0, 0]


def _reference_sig_loss(out, label):
    o = jnp.sum(out.astype(jnp.float32), axis=1)
    p = jnp.sum(label.astype(jnp.float32), axis=1)
    eps = 1e-08
    loss = p * -jnp.log(o + eps) + (1.0 - p) * -jnp.log(1.0 - o + eps)
    return jnp.mean(loss)


if __name__ == "__main__":
    key = jax.random.PRNGKey(0)
    k1, k2 = jax.random.split(key)
    B, C = 20, 32
    # Keep per-row sums in (0, 1) so log(out) and log(1 - out) are well-defined,
    # matching the intended use of this sigmoid-style loss.
    out = jax.random.uniform(k1, (B, C), dtype=jnp.float32) / C
    label = (jax.random.uniform(k2, (B, 1), dtype=jnp.float32) > 0.5).astype(jnp.float32)
    label = jnp.broadcast_to(label / C, (B, C))

    ref = _reference_sig_loss(out, label)

    # 1) Auto-picked tile (multi-step grid with masked edge tile at B=20).
    loss = sig_loss(out, label)
    jax.block_until_ready(loss)
    assert jnp.allclose(loss, ref, rtol=1e-5, atol=1e-5), (loss, ref)

    # 2) Force a smaller tile to exercise the pipelined grid + edge masking path.
    loss_tiled = sig_loss(out, label, block_rows=8)
    jax.block_until_ready(loss_tiled)
    assert jnp.allclose(loss_tiled, ref, rtol=1e-5, atol=1e-5), (loss_tiled, ref)

    # 3) bf16 inputs stay bf16 on the wire; the f32 cast happens in-kernel.
    out_bf16 = out.astype(jnp.bfloat16)
    label_bf16 = label.astype(jnp.bfloat16)
    loss_bf16 = sig_loss(out_bf16, label_bf16)
    jax.block_until_ready(loss_bf16)
    ref_bf16 = _reference_sig_loss(out_bf16, label_bf16)
    assert jnp.allclose(loss_bf16, ref_bf16, rtol=1e-4, atol=1e-4), (loss_bf16, ref_bf16)

    print("KERNEL_OK")
</pallas_src>

<mosaic_0001>
module attributes {stable_mosaic.version = 11 : i64} {
  func.func @_sigloss_kernel(%arg0: i32, %arg1: memref<16x32xf32, #tpu.memory_space<vmem>>, %arg2: memref<16x32xf32, #tpu.memory_space<vmem>>, %arg3: memref<1x1xf32, #tpu.memory_space<vmem>>) attributes {dimension_semantics = [#tpu.dimension_semantics<arbitrary>], iteration_bounds = array<i64: 2>, scalar_prefetch = 0 : i64, scratch_operands = 0 : i64, tpu.core_type = #tpu.core_type<tc>, window_params = [{transform_indices = @transform_0, window_bounds = array<i64: 16, 32>}, {transform_indices = @transform_1, window_bounds = array<i64: 16, 32>}, {pipeline_mode = #tpu.pipeline_mode<synchronous>, transform_indices = @transform_2, window_bounds = array<i64: 1, 1>}]} {
    %c0_i32 = arith.constant 0 : i32
    %0 = arith.cmpi eq, %arg0, %c0_i32 : i32
    %1 = arith.extui %0 : i1 to i32
    %c0_i32_0 = arith.constant 0 : i32
    %2 = arith.cmpi ne, %1, %c0_i32_0 : i32
    scf.if %2 {
      %cst_18 = arith.constant 0.000000e+00 : f32
      %45 = vector.broadcast %cst_18 : f32 to vector<1x1xf32>
      %c0_19 = arith.constant 0 : index
      %c0_20 = arith.constant 0 : index
      %46 = vector.load %arg3[%c0_19, %c0_20] : memref<1x1xf32, #tpu.memory_space<vmem>>, vector<1x1xf32>
      tpu.vector_store %arg3[%c0_19, %c0_20], %45 {strides = array<i32>} : memref<1x1xf32, #tpu.memory_space<vmem>>, vector<1x1xf32>,
    } else {
    }
    %c0 = arith.constant 0 : index
    %c0_1 = arith.constant 0 : index
    %3 = vector.load %arg1[%c0, %c0_1] : memref<16x32xf32, #tpu.memory_space<vmem>>, vector<16x32xf32>
    %c0_2 = arith.constant 0 : index
    %c0_3 = arith.constant 0 : index
    %4 = vector.load %arg2[%c0_2, %c0_3] : memref<16x32xf32, #tpu.memory_space<vmem>>, vector<16x32xf32>
    %cst = arith.constant dense<0.000000e+00> : vector<16xf32>
    %5 = vector.multi_reduction <add>, %3, %cst [1] : vector<16x32xf32> to vector<16xf32>
    %6 = vector.shape_cast %5 : vector<16xf32> to vector<16x1xf32>
    %cst_4 = arith.constant dense<0.000000e+00> : vector<16xf32>
    %7 = vector.multi_reduction <add>, %4, %cst_4 [1] : vector<16x32xf32> to vector<16xf32>
    %8 = vector.shape_cast %7 : vector<16xf32> to vector<16x1xf32>
    %cst_5 = arith.constant 9.99999993E-9 : f32
    %9 = vector.broadcast %cst_5 : f32 to vector<16x1xf32>
    %10 = arith.addf %6, %9 : vector<16x1xf32>
    %11 = math.log %10 : vector<16x1xf32>
    %cst_6 = arith.constant 0.000000e+00 : f32
    %12 = vector.broadcast %cst_6 : f32 to vector<16x1xf32>
    %13 = arith.subf %12, %11 : vector<16x1xf32>
    %14 = arith.mulf %8, %13 : vector<16x1xf32>
    %cst_7 = arith.constant 1.000000e+00 : f32
    %15 = vector.broadcast %cst_7 : f32 to vector<16x1xf32>
    %16 = arith.subf %15, %8 : vector<16x1xf32>
    %cst_8 = arith.constant 1.000000e+00 : f32
    %17 = vector.broadcast %cst_8 : f32 to vector<16x1xf32>
    %18 = arith.subf %17, %6 : vector<16x1xf32>
    %cst_9 = arith.constant 9.99999993E-9 : f32
    %19 = vector.broadcast %cst_9 : f32 to vector<16x1xf32>
    %20 = arith.addf %18, %19 : vector<16x1xf32>
    %21 = math.log %20 : vector<16x1xf32>
    %cst_10 = arith.constant 0.000000e+00 : f32
    %22 = vector.broadcast %cst_10 : f32 to vector<16x1xf32>
    %23 = arith.subf %22, %21 : vector<16x1xf32>
    %24 = arith.mulf %16, %23 : vector<16x1xf32>
    %25 = arith.addf %14, %24 : vector<16x1xf32>
    %26 = tpu.iota {dimensions = array<i32: 0>} : vector<16x1xi32>
    %c16_i32 = arith.constant 16 : i32
    %27 = arith.muli %arg0, %c16_i32 : i32
    %28 = vector.broadcast %27 : i32 to vector<16x1xi32>
    %29 = arith.addi %26, %28 : vector<16x1xi32>
    %c20_i32 = arith.constant 20 : i32
    %30 = vector.broadcast %c20_i32 : i32 to vector<16x1xi32>
    %31 = arith.cmpi slt, %29, %30 : vector<16x1xi32>
    %cst_11 = arith.constant 0.000000e+00 : f32
    %32 = vector.broadcast %cst_11 : f32 to vector<16x1xf32>
    %33 = arith.select %31, %25, %32 : vector<16x1xi1>, vector<16x1xf32>
    %c0_12 = arith.constant 0 : index
    %c0_13 = arith.constant 0 : index
    %34 = vector.load %arg3[%c0_12, %c0_13] : memref<1x1xf32, #tpu.memory_space<vmem>>, vector<1x1xf32>
    %35 = vector.shape_cast %33 : vector<16x1xf32> to vector<1x16x1xf32>
    %cst_14 = arith.constant dense<0.000000e+00> : vector<1xf32>
    %36 = vector.multi_reduction <add>, %35, %cst_14 [1, 2] : vector<1x16x1xf32> to vector<1xf32>
    %37 = vector.shape_cast %36 : vector<1xf32> to vector<1x1x1xf32>
    %38 = vector.extract %37[0, 0, 0] : f32 from vector<1x1x1xf32>
    %39 = vector.broadcast %38 : f32 to vector<1x1xf32>
    %40 = arith.addf %34, %39 : vector<1x1xf32>
    %c0_15 = arith.constant 0 : index
    %c0_16 = arith.constant 0 : index
    %41 = vector.load %arg3[%c0_15, %c0_16] : memref<1x1xf32, #tpu.memory_space<vmem>>, vector<1x1xf32>
    tpu.vector_store %arg3[%c0_15, %c0_16], %40 {strides = array<i32>} : memref<1x1xf32, #tpu.memory_space<vmem>>, vector<1x1xf32>,
    %c1_i32 = arith.constant 1 : i32
    %42 = arith.cmpi eq, %arg0, %c1_i32 : i32
    %43 = arith.extui %42 : i1 to i32
    %c0_i32_17 = arith.constant 0 : i32
    %44 = arith.cmpi ne, %43, %c0_i32_17 : i32
    scf.if %44 {
      %c0_18 = arith.constant 0 : index
      %c0_19 = arith.constant 0 : index
      %45 = vector.load %arg3[%c0_18, %c0_19] : memref<1x1xf32, #tpu.memory_space<vmem>>, vector<1x1xf32>
      %cst_20 = arith.constant 5.000000e-02 : f32
      %46 = vector.broadcast %cst_20 : f32 to vector<1x1xf32>
      %47 = arith.mulf %45, %46 : vector<1x1xf32>
      %c0_21 = arith.constant 0 : index
      %c0_22 = arith.constant 0 : index
      %48 = vector.load %arg3[%c0_21, %c0_22] : memref<1x1xf32, #tpu.memory_space<vmem>>, vector<1x1xf32>
      tpu.vector_store %arg3[%c0_21, %c0_22], %47 {strides = array<i32>} : memref<1x1xf32, #tpu.memory_space<vmem>>, vector<1x1xf32>,
    } else {
    }
    return
  }
  func.func @transform_0(%arg0: i32) -> (i32, i32) {
    %c0_i32 = arith.constant 0 : i32
    %c0_i32_0 = arith.constant 0 : i32
    return %arg0, %c0_i32 : i32, i32
  }
  func.func @transform_1(%arg0: i32) -> (i32, i32) {
    %c0_i32 = arith.constant 0 : i32
    %c0_i32_0 = arith.constant 0 : i32
    return %arg0, %c0_i32 : i32, i32
  }
  func.func @transform_2(%arg0: i32) -> (i32, i32) {
    %c0_i32 = arith.constant 0 : i32
    %c0_i32_0 = arith.constant 0 : i32
    %c0_i32_1 = arith.constant 0 : i32
    return %c0_i32, %c0_i32_0 : i32, i32
  }
}

</mosaic_0001>

<llo_original>
// kernel: tpu_custom_call.1
$region0: #{tpu_custom_call.1}
  #allocation0 [shape = 'u32[]', space=smem, size = 0x4, offset = 0x4, fixed_abs, tag = 'smem constant byte address 0x4 - core index']
  #allocation1 [shape = 'u32[144,128]{1,0:T(1,128)}', space=vmem, size = 0x12000, scoped, tag = 'internal scratch']
  %s0 = inlined_call_operand.hbm [shape: f32[20,32], index: 0, kind: input, shape index: {}]
  %s1 = inlined_call_operand.hbm [shape: f32[20,32], index: 1, kind: input, shape index: {}]
  %s2 = inlined_call_operand.hbm [shape: f32[1,1], index: 2, kind: output, shape index: {}]
  %s3 = sld [smem:[#allocation0]]
  $region57: #{tpu_custom_call.1} parent=0
    _
  %s5 = ssub.s32 1, %s3
  %s6 = scalar_select 0, %s5, %s3
  $region1: #{tpu_custom_call.1} parent=0
    #allocation2 [shape = 'u8[16384]{0}', space=vmem, size = 0x4000, scoped, tag = 'input window, operand 0']
    #allocation3 [shape = 's32[2]{0}', space=sflag, size = 0x8, scoped, tag = 'scoped memory for tpu_custom_call.1']
    #allocation4 [shape = 's32[2]{0}', space=sflag, size = 0x8, scoped, tag = 'scoped memory for tpu_custom_call.1']
    #allocation5 [shape = 'u8[16384]{0}', space=vmem, size = 0x4000, scoped, tag = 'input window, operand 1']
    #allocation6 [shape = 's32[2]{0}', space=sflag, size = 0x8, scoped, tag = 'scoped memory for tpu_custom_call.1']
    #allocation7 [shape = 'u8[512]{0}', space=vmem, size = 0x400, scoped, tag = 'output window, operand 0, single buffered']
    %7 = vsyncpa [#allocation3], 0
    %s8 = scalar_lea.sflag [#allocation3], 1
    %9 = vsyncpa %s8, 0
    %10 = vsyncpa [#allocation6], 0
    %s11 = scalar_lea.sflag [#allocation6], 1
    %12 = vsyncpa %s11, 0
    %13 = vsyncpa [#allocation4], 0
    loop: start=0, step=1, limit=4
    $region2: #{tpu_custom_call.1} parent=1 // loop_pre_header
      _
    $region3: #{tpu_custom_call.1} parent=1 // loop_header
      %s15 = sphi 0, %s19
      %p16 = scmp.ge.s32.totalorder %s15, 4
      %s25 = sphi 0, %s27
      %s28 = sphi 0, %s25
      %s29 = sphi 0, %s28
      %s45 = sphi 0, %s29
      %s51 = sphi 0, %s53
      %s54 = sphi 0, %s51
      %s55 = sphi 0, %s54
      %s71 = sphi 0, %s55
      %s75 = sphi 0, %s75
      %s77 = sphi 0, %s75
      %s78 = sphi 0, %s77
      %s92 = sphi 0, %s78
    $region4: #{tpu_custom_call.1} parent=1 // loop_header_branch
      %18 = sbr.rel (%p16) target = $region8
    $region5: #{tpu_custom_call.1} parent=1 // loop_body
      %s20 = ssub.s32 %s15, 1
      %s21 = ssub.s32 %s15, 2
      %s22 = sadd.s32 %s15, 1
      %s23 = ssub.s32 %s15, %s22
      %p24 = scmp.eq.s32.totalorder %s23, 0
      %s26 = sadd.s32 %s25, 1
      %s27 = scalar_select %p24, %s25, %s26
      %p30 = pneg %p24
      %p31 = scmp.eq.s32.totalorder %s15, 1
      %p32 = por %p30, %p31
      %p33 = scmp.ne.s32.totalorder %s25, %s28
      %p34 = scmp.eq.s32.totalorder %s15, 0
      %p35 = por %p33, %p34
      %p36 = scmp.ne.s32.totalorder %s25, %s28
      %p37 = scmp.eq.s32.totalorder %s20, 1
      %p38 = por %p36, %p37
      %p39 = scmp.ne.s32.totalorder %s28, %s29
      %p40 = scmp.eq.s32.totalorder %s20, 0
      %p41 = por %p39, %p40
      %p42 = scmp.ne.s32.totalorder %s28, %s29
      %p43 = scmp.eq.s32.totalorder %s21, 1
      %p44 = por %p42, %p43
      %p46 = scmp.ne.s32.totalorder %s29, %s45
      %p47 = scmp.eq.s32.totalorder %s21, 0
      %p48 = por %p46, %p47
      %s49 = ssub.s32 %s15, %s22
      %p50 = scmp.eq.s32.totalorder %s49, 0
      %s52 = sadd.s32 %s51, 1
      %s53 = scalar_select %p50, %s51, %s52
      %p56 = pneg %p50
      %p57 = scmp.eq.s32.totalorder %s15, 1
      %p58 = por %p56, %p57
      %p59 = scmp.ne.s32.totalorder %s51, %s54
      %p60 = scmp.eq.s32.totalorder %s15, 0
      %p61 = por %p59, %p60
      %p62 = scmp.ne.s32.totalorder %s51, %s54
      %p63 = scmp.eq.s32.totalorder %s20, 1
      %p64 = por %p62, %p63
      %p65 = scmp.ne.s32.totalorder %s54, %s55
      %p66 = scmp.eq.s32.totalorder %s20, 0
      %p67 = por %p65, %p66
      %p68 = scmp.ne.s32.totalorder %s54, %s55
      %p69 = scmp.eq.s32.totalorder %s21, 1
      %p70 = por %p68, %p69
      %p72 = scmp.ne.s32.totalorder %s55, %s71
      %p73 = scmp.eq.s32.totalorder %s21, 0
      %p74 = por %p72, %p73
      %s76 = sadd.s32 %s75, 1
      %p79 = scmp.eq.s32.totalorder %s15, 1
      %p80 = scmp.ne.s32.totalorder %s75, %s77
      %p81 = scmp.eq.s32.totalorder %s15, 0
      %p82 = por %p80, %p81
      %p83 = scmp.ne.s32.totalorder %s75, %s77
      %p84 = scmp.eq.s32.totalorder %s20, 1
      %p85 = por %p83, %p84
      %p86 = scmp.ne.s32.totalorder %s77, %s78
      %p87 = scmp.eq.s32.totalorder %s20, 0
      %p88 = por %p86, %p87
      %p89 = scmp.ne.s32.totalorder %s77, %s78
      %p90 = scmp.eq.s32.totalorder %s21, 1
      %p91 = por %p89, %p90
      %p93 = scmp.ne.s32.totalorder %s78, %s92
      %p94 = scmp.eq.s32.totalorder %s21, 0
      %p95 = por %p93, %p94
      %p96 = scmp.le.s32.totalorder 1, %s15
      %p97 = scmp.lt.s32.totalorder %s15, 3
      %p98 = pnand %p96, %p97
      %p99 = pneg %p98
      // Predicated region
      $region9: #{tpu_custom_call.1} parent=5 // pred_check
        _
      $region10: #{tpu_custom_call.1} parent=5 // pred_check_branch
        %101 = sbr.rel (%p98) target = $region12
      $region11: #{tpu_custom_call.1} parent=5 // pred_region
        %s102 = ssub.s32 %s15, 1
      $region12: #{tpu_custom_call.1} parent=5 // pred_fallthru
        _
      %p103 = scmp.lt.s32.totalorder %s15, 2
      // Predicated region
      $region13: #{tpu_custom_call.1} parent=5 // pred_check
        %p104 = pneg %p103
      $region14: #{tpu_custom_call.1} parent=5 // pred_check_branch
        %106 = sbr.rel (%p104) target = $region16
      $region15: #{tpu_custom_call.1} parent=5 // pred_region
        // Predicated region
        $region17: #{tpu_custom_call.1} parent=15 // pred_check
          %p107 = pneg %p35
        $region18: #{tpu_custom_call.1} parent=15 // pred_check_branch
          %109 = sbr.rel (%p107) target = $region20
        $region19: #{tpu_custom_call.1} parent=15 // pred_region
          %s110 = sand.u32 %s25, 1
          %s111 = scalar_lea.sflag [#allocation3], %s110
          %s112 = sand.u32 %s25, 1
          %s113 = smul.addr %s112, 16
          %s114 = scalar_lea.vmem [#allocation2], %s113
          %s115 = smul.u32 2, %s15
          %s116 = ssub.s32 3, %s115
          %p117 = scmp.lt.s32.totalorder %s116, 2
          %s118 = scalar_select %p117, %s116, 2
          %s119 = smul.u32 128, %s118
          %s121 = ssub.s32 256, %s119
          %122 = vsyncadd %s111, %s121
          %p123 = scmp.ne.s32.totalorder 0, %s119
          %s124 = smul.addr %s115, 128
          %s125 = scalar_lea.hbm %s0, %s124
          %s126 = smul.u32 8, %s118
          %s127 = sshll.u32 %s114, 4
          %s128 = int_to_ptr.vmem [resolvable:$true] %s127
          %s129 = sshll.u32 %s126, 4
          %133 = dma.hbm_to_vmem [thread:$0]  (%p123), %s125, %s129, %s128, %s111, 128, 128, 8
        $region20: #{tpu_custom_call.1} parent=15 // pred_fallthru
          _
        // Predicated region
        $region21: #{tpu_custom_call.1} parent=15 // pred_check
          %p134 = pneg %p61
        $region22: #{tpu_custom_call.1} parent=15 // pred_check_branch
          %136 = sbr.rel (%p134) target = $region24
        $region23: #{tpu_custom_call.1} parent=15 // pred_region
          %s137 = sand.u32 %s51, 1
          %s138 = scalar_lea.sflag [#allocation6], %s137
          %s139 = sand.u32 %s51, 1
          %s140 = smul.addr %s139, 16
          %s141 = scalar_lea.vmem [#allocation5], %s140
          %s142 = smul.u32 2, %s15
          %s143 = ssub.s32 3, %s142
          %p144 = scmp.lt.s32.totalorder %s143, 2
          %s145 = scalar_select %p144, %s143, 2
          %s146 = smul.u32 128, %s145
          %s148 = ssub.s32 256, %s146
          %149 = vsyncadd %s138, %s148
          %p150 = scmp.ne.s32.totalorder 0, %s146
          %s151 = smul.addr %s142, 128
          %s152 = scalar_lea.hbm %s1, %s151
          %s153 = smul.u32 8, %s145
          %s154 = sshll.u32 %s141, 4
          %s155 = int_to_ptr.vmem [resolvable:$true] %s154
          %s156 = sshll.u32 %s153, 4
          %160 = dma.hbm_to_vmem [thread:$0]  (%p150), %s152, %s156, %s155, %s138, 128, 128, 8
        $region24: #{tpu_custom_call.1} parent=15 // pred_fallthru
          _
      $region16: #{tpu_custom_call.1} parent=5 // pred_fallthru
        _
      %p161 = scmp.le.s32.totalorder 1, %s15
      %p162 = scmp.lt.s32.totalorder %s15, 3
      %p163 = pnand %p161, %p162
      %p164 = pneg %p163
      // Predicated region
      $region25: #{tpu_custom_call.1} parent=5 // pred_check
        _
      $region26: #{tpu_custom_call.1} parent=5 // pred_check_branch
        %166 = sbr.rel (%p163) target = $region28
      $region27: #{tpu_custom_call.1} parent=5 // pred_region
        %s167 = ssub.s32 %s15, 1
        %s168 = sand.u32 %s28, 1
        %s169 = scalar_lea.sflag [#allocation3], %s168
        %s170 = sand.u32 %s28, 1
        %s171 = smul.addr %s170, 16
        %s172 = scalar_lea.vmem [#allocation2], %s171
        // Predicated region
        $region29: #{tpu_custom_call.1} parent=27 // pred_check
          %p173 = pneg %p41
        $region30: #{tpu_custom_call.1} parent=27 // pred_check_branch
          %175 = sbr.rel (%p173) target = $region32
        $region31: #{tpu_custom_call.1} parent=27 // pred_region
          %176 = dma.done %s169, 256
        $region32: #{tpu_custom_call.1} parent=27 // pred_fallthru
          _
        %s177 = sand.u32 %s54, 1
        %s178 = scalar_lea.sflag [#allocation6], %s177
        %s179 = sand.u32 %s54, 1
        %s180 = smul.addr %s179, 16
        %s181 = scalar_lea.vmem [#allocation5], %s180
        // Predicated region
        $region33: #{tpu_custom_call.1} parent=27 // pred_check
          %p182 = pneg %p67
        $region34: #{tpu_custom_call.1} parent=27 // pred_check_branch
          %184 = sbr.rel (%p182) target = $region36
        $region35: #{tpu_custom_call.1} parent=27 // pred_region
          %185 = dma.done %s178, 256
        $region36: #{tpu_custom_call.1} parent=27 // pred_fallthru
          _
        %s186 = sand.u32 %s28, 1
        %s187 = scalar_lea.sflag [#allocation3], %s186
        %s188 = sand.u32 %s28, 1
        %s189 = smul.addr %s188, 16
        %s190 = scalar_lea.vmem [#allocation2], %s189
        %p191 = pneg %p41
        %p192 = pneg %p38
        %s193 = sand.u32 %s54, 1
        %s194 = scalar_lea.sflag [#allocation6], %s193
        %s195 = sand.u32 %s54, 1
        %s196 = smul.addr %s195, 16
        %s197 = scalar_lea.vmem [#allocation5], %s196
        %p198 = pneg %p67
        %p199 = pneg %p64
        %p200 = pneg %p88
        %p201 = pneg %p85
        %s202 = smul.u32 2, %s20
        %s203 = ssub.s32 3, %s202
        %p204 = scmp.lt.s32.totalorder %s203, 2
        %s205 = scalar_select %p204, %s203, 2
        %s206 = smul.u32 128, %s205
        %s207 = smul.u32 2, %s20
        %s208 = ssub.s32 3, %s207
        %p209 = scmp.lt.s32.totalorder %s208, 2
        %s210 = scalar_select %p209, %s208, 2
        %s211 = smul.u32 128, %s210
        %p212 = scmp.eq.s32.totalorder %s20, 0
        // Predicated region
        $region37: #{tpu_custom_call.1} parent=27 // pred_check
          %p213 = pneg %p212
        $region38: #{tpu_custom_call.1} parent=27 // pred_check_branch
          %215 = sbr.rel (%p213) target = $region40
        $region39: #{tpu_custom_call.1} parent=27 // pred_region
          %vm216 = vcmask 0
          %217 = vst.msk [vmem:[#allocation7] sm:$0x1] %vm216, 0.0
        $region40: #{tpu_custom_call.1} parent=27 // pred_fallthru
          _
        %v218 = vld [vmem:[%s172] sm:$0xff]
        %v219 = vld [vmem:[%s172 + $0x8] sm:$0xff]
        %v220 = vld [vmem:[%s181] sm:$0xff]
        %v221 = vld [vmem:[%s181 + $0x8] sm:$0xff]
        %vm222 = vcmask 261120
        %v223 = vsel %vm222, %v218, 0.0
        %224 = vadd.xlane.f32.xlu0 %v223
        %v225 = vpop.xlane.xlu0 %224
        %v226 = vsel %vm222, %v219, 0.0
        %227 = vadd.xlane.f32.xlu0 %v226
        %v228 = vpop.xlane.xlu0 %227
        %v229 = vsel %vm222, %v220, 0.0
        %230 = vadd.xlane.f32.xlu0 %v229
        %v231 = vpop.xlane.xlu0 %230
        %v232 = vsel %vm222, %v221, 0.0
        %233 = vadd.xlane.f32.xlu0 %v232
        %v234 = vpop.xlane.xlu0 %233
        %v235 = vadd.f32 %v225, 1e-08
        %v236 = vadd.f32 %v228, 1e-08
        %v237 = vlog2.pop %v235
        %v238 = vmul.f32 %v237, 0.6931472
        %v239 = vlog2.pop %v236
        %v240 = vmul.f32 %v239, 0.6931472
        %v241 = vsub.f32 0.0, %v238
        %v242 = vsub.f32 0.0, %v240
        %v243 = vmul.f32 %v231, %v241
        %v244 = vmul.f32 %v234, %v242
        %v245 = vsub.f32 1.0, %v231
        %v246 = vsub.f32 1.0, %v234
        %v247 = vsub.f32 1.0, %v225
        %v248 = vsub.f32 1.0, %v228
        %v249 = vadd.f32 %v247, 1e-08
        %v250 = vadd.f32 %v248, 1e-08
        %v251 = vlog2.pop %v249
        %v252 = vmul.f32 %v251, 0.6931472
        %v253 = vlog2.pop %v250
        %v254 = vmul.f32 %v253, 0.6931472
        %v255 = vsub.f32 0.0, %v252
        %v256 = vsub.f32 0.0, %v254
        %v257 = vmul.f32 %v245, %v255
        %v258 = vmul.f32 %v246, %v256
        %v259 = vadd.f32 %v243, %v257
        %v260 = vadd.f32 %v244, %v258
        %v261 = vlaneseq
        %v262 = vshrl.u32 %v261, 7
        %v263 = vadd.s32 %v262, 8
        %s264 = smul.u32 %s20, 16
        %v265 = vstv %s264
        %v266 = vadd.s32 %v262, %v265
        %v267 = vadd.s32 %v263, %v265
        %vm268 = vcmp.lt.s32.totalorder %v266, 20
        %vm269 = vcmp.lt.s32.totalorder %v267, 20
        %v270 = vsel %vm268, %v259, 0.0
        %v271 = vsel %vm269, %v260, 0.0
        %v272 = vld [vmem:[#allocation7] sm:$0x1]
        %vm273 = vcmask 7168
        %v274 = vsel %vm273, %v270, 0.0
        %v275 = vsel %vm273, %v271, 0.0
        %v276 = vadd.f32 %v274, %v275
        %277 = vadd.xlane.f32.xlu0 %v276
        %v278 = vpop.xlane.xlu0 %277
        %v279 = vrot.slane %v278, 4
        %v280 = vadd.f32 %v278, %v279
        %v281 = vrot.slane %v280, 2
        %v282 = vadd.f32 %v280, %v281
        %v283 = vrot.slane %v282, 1
        %v284 = vadd.f32 %v282, %v283
        %s285 = vtos %v284
        %v286 = vstv %s285
        %v287 = vadd.f32 %v272, %v286
        %vm288 = vcmask 0
        %289 = vst.msk [vmem:[#allocation7] sm:$0x1] %vm288, %v287
        %p290 = scmp.eq.s32.totalorder %s20, 1
        // Predicated region
        $region41: #{tpu_custom_call.1} parent=27 // pred_check
          %p291 = pneg %p290
        $region42: #{tpu_custom_call.1} parent=27 // pred_check_branch
          %293 = sbr.rel (%p291) target = $region44
        $region43: #{tpu_custom_call.1} parent=27 // pred_region
          %v294 = vld [vmem:[#allocation7] sm:$0x1]
          %v295 = vmul.f32 %v294, 0.05
          %296 = vst.msk [vmem:[#allocation7] sm:$0x1] %vm288, %v295
        $region44: #{tpu_custom_call.1} parent=27 // pred_fallthru
          _
        // Predicated region
        $region45: #{tpu_custom_call.1} parent=27 // pred_check
          %p297 = pneg %p85
        $region46: #{tpu_custom_call.1} parent=27 // pred_check_branch
          %299 = sbr.rel (%p297) target = $region48
        $region47: #{tpu_custom_call.1} parent=27 // pred_region
          %s301 = ssub.s32 16, 16
          %302 = vsyncadd [#allocation4], %s301
          %s304 = sshll.u32 [#allocation7], 4
          %s305 = int_to_ptr.vmem [resolvable:$true] %s304
          %307 = dma.vmem_to_hbm [thread:$0]  %s305, 16, %s2, [#allocation4]
        $region48: #{tpu_custom_call.1} parent=27 // pred_fallthru
          _
        // Predicated region
        $region49: #{tpu_custom_call.1} parent=27 // pred_check
          %p308 = pneg %p85
        $region50: #{tpu_custom_call.1} parent=27 // pred_check_branch
          %310 = sbr.rel (%p308) target = $region52
        $region51: #{tpu_custom_call.1} parent=27 // pred_region
          %311 = dma.done [#allocation4], 16
        $region52: #{tpu_custom_call.1} parent=27 // pred_fallthru
          _
      $region28: #{tpu_custom_call.1} parent=5 // pred_fallthru
        _
      %p312 = scmp.le.s32.totalorder 2, %s15
      // Predicated region
      $region53: #{tpu_custom_call.1} parent=5 // pred_check
        %p313 = pneg %p312
      $region54: #{tpu_custom_call.1} parent=5 // pred_check_branch
        %315 = sbr.rel (%p313) target = $region56
      $region55: #{tpu_custom_call.1} parent=5 // pred_region
        %s316 = ssub.s32 %s15, 2
      $region56: #{tpu_custom_call.1} parent=5 // pred_fallthru
        _
    $region6: #{tpu_custom_call.1} parent=1 // loop_footer
      %s19 = sadd.s32 1, %s15
    $region7: #{tpu_custom_call.1} parent=1 // loop_footer_branch
      %14 = sbr.rel target = $region3
    $region8: #{tpu_custom_call.1} parent=1 // loop_exit
      _
    %317 = vsyncpa [#allocation3], 1
    %s318 = scalar_lea.sflag [#allocation3], 1
    %319 = vsyncpa %s318, 1
    %320 = vsyncpa [#allocation6], 1
    %s321 = scalar_lea.sflag [#allocation6], 1
    %322 = vsyncpa %s321, 1
    %323 = vsyncpa [#allocation4], 1
    %s324 = scalar_lea.sflag [#allocation4], 1
    %325 = vsyncpa %s324, 1

</llo_original>
